<compile_context>
chip_gen: v6e
topology: v6e:2x2x1
jax: 0.10.0
libtpu: 0.0.40
codegen_flags: <defaults>
</compile_context>

<pallas_src>
import functools

import jax
import jax.numpy as jnp
from jax import lax
from jax.experimental import pallas as pl
from jax.experimental.pallas import tpu as pltpu


_SQRT1_2 = 0.7071067811865476


def _round_up(a, b):
    return ((a + b - 1) // b) * b


def _cdiv(a, b):
    return (a + b - 1) // b


def _gelu_exact(x):
    """PyTorch nn.GELU() (exact / erf form), erf via A&S 7.1.26 (abs err ~1.5e-7).

    sqrt(1/2) is folded into the polynomial argument and the exponent, and the
    1/(1+p*|z|) divide is routed through pl.reciprocal (EUP slot).
    """
    a1, a2, a3, a4, a5 = (0.254829592, -0.284496736, 1.421413741,
                          -1.453152027, 1.061405429)
    p_folded = 0.3275911 * _SQRT1_2
    ax = jnp.abs(x)
    t = pl.reciprocal(1.0 + p_folded * ax)                 # EUP, exact
    poly = ((((a5 * t + a4) * t + a3) * t + a2) * t + a1) * t
    e = jnp.exp(-0.5 * x * x)                              # EUP
    erf_abs = 1.0 - poly * e
    erf = jnp.where(x >= 0, erf_abs, -erf_abs)
    return 0.5 * x * (1.0 + erf)


def _task2_kernel(x_ref, w_ref, b_ref, w2_ref, out_ref, *, hidden):
    x = x_ref[...]                                                       # (tm, D)
    # Packed matmul: cols [0, H) = dense1(BN(x)), col H = x @ (wr@w2) + (br@w2+b2),
    # cols (H, Hp) are zero padding.
    pre = (jnp.dot(x, w_ref[...], preferred_element_type=jnp.float32)
           + b_ref[...])                                                 # (tm, Hp)
    col = lax.broadcasted_iota(jnp.int32, pre.shape, 1)
    y = jnp.where(col < hidden, _gelu_exact(pre), pre)                   # (tm, Hp)
    # H -> 1 head, laid out lane-dense: (1, Hp) @ (Hp, tm) -> (1, tm).
    # w2_ref = [w2, 1.0, zeros], so the residual/bias column passes straight through.
    y_t = jnp.transpose(y)                                               # (Hp, tm)
    out = jnp.dot(w2_ref[...], y_t, preferred_element_type=jnp.float32)  # (1, tm)
    out_ref[...] = out.astype(out_ref.dtype)


def task2_forward(x, params, *, eps=1e-5):
    """x: (bs, seq, input_size) float32 -> (bs, seq, 1) float32 (eval semantics)."""
    f32 = jnp.float32
    bs, seq, D = x.shape
    H = params["w1"].shape[1]

    # ---- Fold eval-mode BatchNorm1d into dense1 (one-off, wrapper side). ----
    scale = params["gamma"] * lax.rsqrt(params["running_var"] + eps)     # (D,)
    shift = params["beta"] - params["running_mean"] * scale              # (D,)
    w1f = scale[:, None] * params["w1"]                                  # (D, H)
    b1f = params["b1"] + shift @ params["w1"]                            # (H,)

    # ---- Collapse the residual Linear through dense2 (exact algebra). ----
    w2c = params["w2"][:, 0]                                             # (H,)
    v = params["wr"] @ w2c                                               # (D,)
    c = params["br"] @ w2c + params["b2"][0]                             # scalar

    # ---- Lane-aligned packed weights: cols [0,H)=gelu branch, col H=residual. ----
    Hp = _round_up(H + 1, 128)
    W = jnp.zeros((D, Hp), f32).at[:, :H].set(w1f).at[:, H].set(v)       # (D, Hp)
    B = jnp.zeros((1, Hp), f32).at[0, :H].set(b1f).at[0, H].set(c)       # (1, Hp)
    w2e = jnp.zeros((1, Hp), f32).at[0, :H].set(w2c).at[0, H].set(1.0)   # (1, Hp)

    # ---- Row tiling. ----
    rows = bs * seq
    TM_CAP = 1024
    if rows <= 256:
        tm = _round_up(rows, 8)          # single tile; pad <=7 rows below
        num_tiles = 1
    else:
        # >=2 grid steps so v7x can shard across its two TensorCores; 128-multiple
        # tiles keep the lane-dense output stores unmasked.
        tm = min(TM_CAP, _round_up(_cdiv(rows, 2), 128))
        num_tiles = _cdiv(rows, tm)
    rows_p = num_tiles * tm

    x2 = x.reshape(rows, D)
    if rows < tm:                        # tiny inputs only (<=7 rows of padding)
        x2 = jnp.pad(x2, ((0, tm - rows), (0, 0)))
    # For rows > tm the last block may be partial: Pallas clips the input DMA; the
    # stale tail rows produce garbage output columns which are sliced off below.

    kernel = functools.partial(_task2_kernel, hidden=H)

    cost = pl.CostEstimate(
        flops=2 * rows_p * Hp * (D + 1),
        transcendentals=2 * rows_p * Hp,          # exp + reciprocal per element
        bytes_accessed=4 * (rows * D + D * Hp + 2 * Hp + rows_p),
    )

    # VMEM budget: double-buffered x tile + resident weights/bias + output rows
    # + headroom for the (tm, Hp) intermediates.  Keep >=32 MiB (v5e default is
    # only 16 MiB) but never above v7x's 64 MiB physical VMEM.
    vmem_need = 4 * (2 * tm * D + 2 * (D * Hp + 2 * Hp) + 2 * tm + 4 * tm * Hp)
    vmem_limit = int(min(max(2 * vmem_need, 32 * 1024 * 1024), 64 * 1024 * 1024))

    out = pl.pallas_call(
        kernel,
        out_shape=jax.ShapeDtypeStruct((1, rows_p), jnp.float32),
        grid_spec=pltpu.PrefetchScalarGridSpec(
            num_scalar_prefetch=0,
            grid=(num_tiles,),
            in_specs=[
                pl.BlockSpec((tm, D), lambda i: (i, 0)),      # x row tile
                pl.BlockSpec((D, Hp), lambda i: (0, 0)),      # packed weights
                pl.BlockSpec((1, Hp), lambda i: (0, 0)),      # packed bias
                pl.BlockSpec((1, Hp), lambda i: (0, 0)),      # head weights [w2,1,0..]
            ],
            out_specs=pl.BlockSpec((1, tm), lambda i: (0, i)),  # lane-dense rows
        ),
        compiler_params=pltpu.CompilerParams(
            dimension_semantics=("parallel",),
            vmem_limit_bytes=vmem_limit,
        ),
        cost_estimate=cost,
    )(x2, W, B, w2e)

    return out[0, :rows].reshape(bs, seq, 1)


def init_params(key, input_size, hidden_size):
    ks = jax.random.split(key, 10)

    def uniform(k, shape, fan_in):
        lim = 1.0 / (fan_in ** 0.5)
        return jax.random.uniform(k, shape, jnp.float32, -lim, lim)

    return {
        # BatchNorm1d(input_size) parameters + running stats (eval mode).
        "gamma": 1.0 + 0.1 * jax.random.normal(ks[0], (input_size,), jnp.float32),
        "beta": 0.1 * jax.random.normal(ks[1], (input_size,), jnp.float32),
        "running_mean": 0.1 * jax.random.normal(ks[2], (input_size,), jnp.float32),
        "running_var": 1.0 + 0.1 * jnp.abs(
            jax.random.normal(ks[3], (input_size,), jnp.float32)),
        # dense1: input_size -> hidden   (stored (in, out))
        "w1": uniform(ks[4], (input_size, hidden_size), input_size),
        "b1": uniform(ks[5], (hidden_size,), input_size),
        # residual: input_size -> hidden
        "wr": uniform(ks[6], (input_size, hidden_size), input_size),
        "br": uniform(ks[7], (hidden_size,), input_size),
        # dense2: hidden -> 1
        "w2": uniform(ks[8], (hidden_size, 1), hidden_size),
        "b2": uniform(ks[9], (1,), hidden_size),
    }


def reference_forward(x, params, *, eps=1e-5):
    """Pure-JAX reference matching the PyTorch forward (eval semantics)."""
    xn = ((x - params["running_mean"]) * lax.rsqrt(params["running_var"] + eps)
          * params["gamma"] + params["beta"])
    h = jax.nn.gelu(xn @ params["w1"] + params["b1"], approximate=False)
    r = x @ params["wr"] + params["br"]
    y = h + r                       # Dropout(0.1) is identity in eval mode.
    return y @ params["w2"] + params["b2"]


if __name__ == "__main__":
    root = jax.random.PRNGKey(0)

    def run_case(key, bs, seq, hidden):
        k_x, k_p = jax.random.split(key)
        input_size = hidden * 2          # required by nn.BatchNorm1d(hidden_size * 2)
        x = jax.random.normal(k_x, (bs, seq, input_size), jnp.float32)
        params = init_params(k_p, input_size, hidden)
        out = jax.block_until_ready(task2_forward(x, params))
        ref = reference_forward(x, params)
        assert out.shape == (bs, seq, 1)
        # Polynomial erf (abs err ~1.5e-7) + fp reassociation from the residual
        # fold + MXU accumulation order -> differences stay well below 1e-4.
        assert jnp.allclose(out, ref, atol=1e-4, rtol=1e-4), (
            f"mismatch vs reference (bs={bs}, seq={seq}, hidden={hidden})")

    k1, k2 = jax.random.split(root)
    run_case(k1, 4, 8, 32)      # single-tile path (toy shape)
    run_case(k2, 4, 130, 64)    # multi-tile path with a partial last block
    print("KERNEL_OK")
</pallas_src>

<mosaic_0001>
module attributes {stable_mosaic.version = 11 : i64} {
  func.func @_task2_kernel(%arg0: i32, %arg1: memref<32x64xf32, #tpu.memory_space<vmem>>, %arg2: memref<64x128xf32, #tpu.memory_space<vmem>>, %arg3: memref<1x128xf32, #tpu.memory_space<vmem>>, %arg4: memref<1x128xf32, #tpu.memory_space<vmem>>, %arg5: memref<1x32xf32, #tpu.memory_space<vmem>>) attributes {dimension_semantics = [#tpu.dimension_semantics<parallel>], iteration_bounds = array<i64: 1>, scalar_prefetch = 0 : i64, scratch_operands = 0 : i64, tpu.core_type = #tpu.core_type<tc>, window_params = [{transform_indices = @transform_0, window_bounds = array<i64: 32, 64>}, {pipeline_mode = #tpu.pipeline_mode<synchronous>, transform_indices = @transform_1, window_bounds = array<i64: 64, 128>}, {pipeline_mode = #tpu.pipeline_mode<synchronous>, transform_indices = @transform_2, window_bounds = array<i64: 1, 128>}, {pipeline_mode = #tpu.pipeline_mode<synchronous>, transform_indices = @transform_3, window_bounds = array<i64: 1, 128>}, {transform_indices = @transform_4, window_bounds = array<i64: 1, 32>}]} {
    %c0 = arith.constant 0 : index
    %c0_0 = arith.constant 0 : index
    %0 = vector.load %arg1[%c0, %c0_0] : memref<32x64xf32, #tpu.memory_space<vmem>>, vector<32x64xf32>
    %c0_1 = arith.constant 0 : index
    %c0_2 = arith.constant 0 : index
    %1 = vector.load %arg2[%c0_1, %c0_2] : memref<64x128xf32, #tpu.memory_space<vmem>>, vector<64x128xf32>
    %cst = arith.constant dense<0.000000e+00> : vector<32x128xf32>
    %2 = tpu.matmul %0, %1, %cst {dimension_numbers = #tpu.dot_dimension_numbers<[1], [0], [0], [1], [0, 0, 1, 1], [], []>} : vector<32x64xf32>, vector<64x128xf32>, vector<32x128xf32> -> vector<32x128xf32>
    %c0_3 = arith.constant 0 : index
    %c0_4 = arith.constant 0 : index
    %3 = vector.load %arg3[%c0_3, %c0_4] : memref<1x128xf32, #tpu.memory_space<vmem>>, vector<1x128xf32>
    %4 = vector.broadcast %3 : vector<1x128xf32> to vector<32x128xf32>
    %5 = arith.addf %2, %4 : vector<32x128xf32>
    %6 = tpu.iota {dimensions = array<i32: 1>} : vector<32x128xi32>
    %c32_i32 = arith.constant 32 : i32
    %7 = vector.broadcast %c32_i32 : i32 to vector<32x128xi32>
    %8 = arith.cmpi slt, %6, %7 : vector<32x128xi32>
    %9 = math.absf %5 : vector<32x128xf32>
    %cst_5 = arith.constant 0.231641889 : f32
    %10 = vector.broadcast %cst_5 : f32 to vector<32x128xf32>
    %11 = arith.mulf %10, %9 : vector<32x128xf32>
    %cst_6 = arith.constant 1.000000e+00 : f32
    %12 = vector.broadcast %cst_6 : f32 to vector<32x128xf32>
    %13 = arith.addf %12, %11 : vector<32x128xf32>
    %14 = tpu.reciprocal %13 : vector<32x128xf32> -> vector<32x128xf32>
    %cst_7 = arith.constant 1.06140542 : f32
    %15 = vector.broadcast %cst_7 : f32 to vector<32x128xf32>
    %16 = arith.mulf %15, %14 : vector<32x128xf32>
    %cst_8 = arith.constant -1.45315206 : f32
    %17 = vector.broadcast %cst_8 : f32 to vector<32x128xf32>
    %18 = arith.addf %16, %17 : vector<32x128xf32>
    %19 = arith.mulf %18, %14 : vector<32x128xf32>
    %cst_9 = arith.constant 1.42141378 : f32
    %20 = vector.broadcast %cst_9 : f32 to vector<32x128xf32>
    %21 = arith.addf %19, %20 : vector<32x128xf32>
    %22 = arith.mulf %21, %14 : vector<32x128xf32>
    %cst_10 = arith.constant -0.284496725 : f32
    %23 = vector.broadcast %cst_10 : f32 to vector<32x128xf32>
    %24 = arith.addf %22, %23 : vector<32x128xf32>
    %25 = arith.mulf %24, %14 : vector<32x128xf32>
    %cst_11 = arith.constant 0.254829586 : f32
    %26 = vector.broadcast %cst_11 : f32 to vector<32x128xf32>
    %27 = arith.addf %25, %26 : vector<32x128xf32>
    %28 = arith.mulf %27, %14 : vector<32x128xf32>
    %cst_12 = arith.constant -5.000000e-01 : f32
    %29 = vector.broadcast %cst_12 : f32 to vector<32x128xf32>
    %30 = arith.mulf %29, %5 : vector<32x128xf32>
    %31 = arith.mulf %30, %5 : vector<32x128xf32>
    %32 = math.exp %31 : vector<32x128xf32>
    %33 = arith.mulf %28, %32 : vector<32x128xf32>
    %cst_13 = arith.constant 1.000000e+00 : f32
    %34 = vector.broadcast %cst_13 : f32 to vector<32x128xf32>
    %35 = arith.subf %34, %33 : vector<32x128xf32>
    %cst_14 = arith.constant 0.000000e+00 : f32
    %36 = vector.broadcast %cst_14 : f32 to vector<32x128xf32>
    %37 = arith.cmpf oge, %5, %36 : vector<32x128xf32>
    %cst_15 = arith.constant 0.000000e+00 : f32
    %38 = vector.broadcast %cst_15 : f32 to vector<32x128xf32>
    %39 = arith.subf %38, %35 : vector<32x128xf32>
    %40 = arith.select %37, %35, %39 : vector<32x128xi1>, vector<32x128xf32>
    %cst_16 = arith.constant 5.000000e-01 : f32
    %41 = vector.broadcast %cst_16 : f32 to vector<32x128xf32>
    %42 = arith.mulf %41, %5 : vector<32x128xf32>
    %cst_17 = arith.constant 1.000000e+00 : f32
    %43 = vector.broadcast %cst_17 : f32 to vector<32x128xf32>
    %44 = arith.addf %43, %40 : vector<32x128xf32>
    %45 = arith.mulf %42, %44 : vector<32x128xf32>
    %46 = arith.select %8, %45, %5 : vector<32x128xi1>, vector<32x128xf32>
    %47 = tpu.transpose %46, [1, 0] : vector<32x128xf32> -> vector<128x32xf32>
    %c0_18 = arith.constant 0 : index
    %c0_19 = arith.constant 0 : index
    %48 = vector.load %arg4[%c0_18, %c0_19] : memref<1x128xf32, #tpu.memory_space<vmem>>, vector<1x128xf32>
    %cst_20 = arith.constant dense<0.000000e+00> : vector<1x32xf32>
    %49 = tpu.matmul %48, %47, %cst_20 {dimension_numbers = #tpu.dot_dimension_numbers<[1], [0], [0], [1], [0, 0, 1, 1], [], []>} : vector<1x128xf32>, vector<128x32xf32>, vector<1x32xf32> -> vector<1x32xf32>
    %c0_21 = arith.constant 0 : index
    %c0_22 = arith.constant 0 : index
    %50 = vector.load %arg5[%c0_21, %c0_22] : memref<1x32xf32, #tpu.memory_space<vmem>>, vector<1x32xf32>
    tpu.vector_store %arg5[%c0_21, %c0_22], %49 {strides = array<i32>} : memref<1x32xf32, #tpu.memory_space<vmem>>, vector<1x32xf32>,
    return
  }
  func.func @transform_0(%arg0: i32) -> (i32, i32) {
    %c0_i32 = arith.constant 0 : i32
    %c0_i32_0 = arith.constant 0 : i32
    return %arg0, %c0_i32 : i32, i32
  }
  func.func @transform_1(%arg0: i32) -> (i32, i32) {
    %c0_i32 = arith.constant 0 : i32
    %c0_i32_0 = arith.constant 0 : i32
    %c0_i32_1 = arith.constant 0 : i32
    return %c0_i32, %c0_i32_0 : i32, i32
  }
  func.func @transform_2(%arg0: i32) -> (i32, i32) {
    %c0_i32 = arith.constant 0 : i32
    %c0_i32_0 = arith.constant 0 : i32
    %c0_i32_1 = arith.constant 0 : i32
    return %c0_i32, %c0_i32_0 : i32, i32
  }
  func.func @transform_3(%arg0: i32) -> (i32, i32) {
    %c0_i32 = arith.constant 0 : i32
    %c0_i32_0 = arith.constant 0 : i32
    %c0_i32_1 = arith.constant 0 : i32
    return %c0_i32, %c0_i32_0 : i32, i32
  }
  func.func @transform_4(%arg0: i32) -> (i32, i32) {
    %c0_i32 = arith.constant 0 : i32
    %c0_i32_0 = arith.constant 0 : i32
    return %c0_i32, %arg0 : i32, i32
  }
}

</mosaic_0001>

<llo_original>
// kernel: tpu_custom_call.1
$region0: #{tpu_custom_call.1}
  #allocation0 [shape = 'u32[]', space=smem, size = 0x4, offset = 0x4, fixed_abs, tag = 'smem constant byte address 0x4 - core index']
  #allocation1 [shape = 'u32[144,128]{1,0:T(1,128)}', space=vmem, size = 0x12000, scoped, tag = 'internal scratch']
  %s0 = inlined_call_operand.hbm [shape: f32[32,64], index: 0, kind: input, shape index: {}]
  %s1 = inlined_call_operand.hbm [shape: f32[64,128], index: 1, kind: input, shape index: {}]
  %s2 = inlined_call_operand.vmem [shape: f32[1,128], index: 2, kind: input, shape index: {}]
  %s3 = inlined_call_operand.vmem [shape: f32[1,128], index: 3, kind: input, shape index: {}]
  %s4 = inlined_call_operand.hbm [shape: f32[1,32], index: 4, kind: output, shape index: {}]
  %s5 = sld [smem:[#allocation0]]
  $region34: #{tpu_custom_call.1} parent=0
    _
  %s7 = ssub.s32 1, %s5
  %s8 = scalar_select 0, %s7, %s5
  $region1: #{tpu_custom_call.1} parent=0
    #allocation2 [shape = 'u8[16384]{0}', space=vmem, size = 0x4000, scoped, tag = 'input window, operand 0, single buffered']
    #allocation3 [shape = 's32[1]{0}', space=sflag, size = 0x4, scoped, tag = 'scoped memory for tpu_custom_call.1']
    #allocation4 [shape = 's32[1]{0}', space=sflag, size = 0x4, scoped, tag = 'scoped memory for tpu_custom_call.1']
    #allocation5 [shape = 'u8[32768]{0}', space=vmem, size = 0x8000, scoped, tag = 'input window, operand 1, single buffered']
    #allocation6 [shape = 's32[1]{0}', space=sflag, size = 0x4, scoped, tag = 'scoped memory for tpu_custom_call.1']
    #allocation7 [shape = 'u8[512]{0}', space=vmem, size = 0x400, scoped, tag = 'output window, operand 0, single buffered']
    %9 = vsyncpa [#allocation3], 0
    %10 = vsyncpa [#allocation6], 0
    %11 = vsyncpa [#allocation4], 0
    // Predicated region
    $region2: #{tpu_custom_call.1} parent=1 // pred_check
      _
    $region3: #{tpu_custom_call.1} parent=1 // pred_check_branch
      %13 = sbr.rel (0) target = $region5
    $region4: #{tpu_custom_call.1} parent=1 // pred_region
      %s15 = ssub.s32 512, 512
      %16 = vsyncadd [#allocation3], %s15
      %s17 = sshll.u32 [#allocation2], 4
      %s18 = int_to_ptr.vmem [resolvable:$true] %s17
      %23 = dma.hbm_to_vmem [thread:$0]  %s0, 512, %s18, [#allocation3], 128, 128, 8
    $region5: #{tpu_custom_call.1} parent=1 // pred_fallthru
      _
    // Predicated region
    $region6: #{tpu_custom_call.1} parent=1 // pred_check
      _
    $region7: #{tpu_custom_call.1} parent=1 // pred_check_branch
      %25 = sbr.rel (0) target = $region9
    $region8: #{tpu_custom_call.1} parent=1 // pred_region
      %s27 = ssub.s32 1024, 1024
      %28 = vsyncadd [#allocation6], %s27
      %s29 = sshll.u32 [#allocation5], 4
      %s30 = int_to_ptr.vmem [resolvable:$true] %s29
      %35 = dma.hbm_to_vmem [thread:$0]  %s1, 1024, %s30, [#allocation6], 128, 128, 8
    $region9: #{tpu_custom_call.1} parent=1 // pred_fallthru
      _
    // Predicated region
    $region10: #{tpu_custom_call.1} parent=1 // pred_check
      _
    $region11: #{tpu_custom_call.1} parent=1 // pred_check_branch
      %37 = sbr.rel (0) target = $region13
    $region12: #{tpu_custom_call.1} parent=1 // pred_region
      _
    $region13: #{tpu_custom_call.1} parent=1 // pred_fallthru
      _
    // Predicated region
    $region14: #{tpu_custom_call.1} parent=1 // pred_check
      _
    $region15: #{tpu_custom_call.1} parent=1 // pred_check_branch
      %39 = sbr.rel (0) target = $region17
    $region16: #{tpu_custom_call.1} parent=1 // pred_region
      _
    $region17: #{tpu_custom_call.1} parent=1 // pred_fallthru
      _
    // Predicated region
    $region18: #{tpu_custom_call.1} parent=1 // pred_check
      _
    $region19: #{tpu_custom_call.1} parent=1 // pred_check_branch
      %41 = sbr.rel (0) target = $region21
    $region20: #{tpu_custom_call.1} parent=1 // pred_region
      %42 = dma.done [#allocation3], 512
    $region21: #{tpu_custom_call.1} parent=1 // pred_fallthru
      _
    // Predicated region
    $region22: #{tpu_custom_call.1} parent=1 // pred_check
      _
    $region23: #{tpu_custom_call.1} parent=1 // pred_check_branch
      %44 = sbr.rel (0) target = $region25
    $region24: #{tpu_custom_call.1} parent=1 // pred_region
      %45 = dma.done [#allocation6], 1024
    $region25: #{tpu_custom_call.1} parent=1 // pred_fallthru
      _
    %v46 = vld [vmem:[#allocation2] sm:$0xff]
    %v47 = vld [vmem:[#allocation2 + $0x8] sm:$0xff]
    %v48 = vld [vmem:[#allocation2 + $0x10] sm:$0xff]
    %v49 = vld [vmem:[#allocation2 + $0x18] sm:$0xff]
    %v50 = vld [vmem:[#allocation5] sm:$0xff]
    %v51 = vld [vmem:[#allocation5 + $0x8] sm:$0xff]
    %v52 = vld [vmem:[#allocation5 + $0x10] sm:$0xff]
    %v53 = vld [vmem:[#allocation5 + $0x18] sm:$0xff]
    %v54 = vld [vmem:[#allocation5 + $0x20] sm:$0xff]
    %v55 = vld [vmem:[#allocation5 + $0x28] sm:$0xff]
    %v56 = vld [vmem:[#allocation5 + $0x30] sm:$0xff]
    %v57 = vld [vmem:[#allocation5 + $0x38] sm:$0xff]
    %v58 = vld [vmem:[%s2] sm:$0x1]
    %v60 = vlaneseq
    %v61 = vshrl.u32 %v60, 7
    %v62 = vsub.s32 0, %v61
    %v63 = vrot.slane %v58, %v62
    %vm65 = vcmask 523264
    %v67 = vsel %vm65, %v46, 0
    %v70 = vsel %vm65, %v47, 0
    %v73 = vsel %vm65, %v48, 0
    %v76 = vsel %vm65, %v49, 0
    %78 = vmatprep.subr.mxu0 0.0
    %79 = vmatpush1.msra.mxu0 0.0
    %80 = vmatprep.subr.mxu0 0.0
    %81 = vmatpush1.msra.mxu0 0.0
    %82 = vmatprep.subr.mxu0 0.0
    %83 = vmatpush1.msra.mxu0 0.0
    %84 = vmatprep.subr.mxu0 0.0
    %85 = vmatpush1.msra.mxu0 0.0
    %86 = vmatprep.subr.mxu0 0.0
    %87 = vmatpush1.msra.mxu0 0.0
    %88 = vmatprep.subr.mxu0 0.0
    %89 = vmatpush1.msra.mxu0 0.0
    %90 = vmatprep.subr.mxu0 0.0
    %91 = vmatpush1.msra.mxu0 0.0
    %92 = vmatprep.subr.mxu0 0.0
    %93 = vmatpush1.msra.mxu0 0.0
    %94 = vmatprep.subr.mxu0 0.0
    %95 = vmatpush1.msra.mxu0 %v57
    %96 = vmatprep.subr.mxu0 0.0
    %97 = vmatpush1.msra.mxu0 %v56
    %98 = vmatprep.subr.mxu0 0.0
    %99 = vmatpush1.msra.mxu0 %v55
    %100 = vmatprep.subr.mxu0 0.0
    %101 = vmatpush1.msra.mxu0 %v54
    %102 = vmatprep.subr.mxu0 0.0
    %103 = vmatpush1.msra.mxu0 %v53
    %104 = vmatprep.subr.mxu0 0.0
    %105 = vmatpush1.msra.mxu0 %v52
    %106 = vmatprep.subr.mxu0 0.0
    %107 = vmatpush1.msra.mxu0 %v51
    %108 = vmatprep.subr.mxu0 0.0
    %109 = vmatpush1.msra.mxu0 %v50
    %110 = vmatprep.subr.mxu0 0.0
    %111 = vmatpush2.msra.mxu0 0.0
    %112 = vmatprep.subr.mxu0 0.0
    %113 = vmatpush2.msra.mxu0 0.0
    %114 = vmatprep.subr.mxu0 0.0
    %115 = vmatpush2.msra.mxu0 0.0
    %116 = vmatprep.subr.mxu0 0.0
    %117 = vmatpush2.msra.mxu0 0.0
    %118 = vmatprep.subr.mxu0 0.0
    %119 = vmatpush2.msra.mxu0 0.0
    %120 = vmatprep.subr.mxu0 0.0
    %121 = vmatpush2.msra.mxu0 0.0
    %122 = vmatprep.subr.mxu0 0.0
    %123 = vmatpush2.msra.mxu0 0.0
    %124 = vmatprep.subr.mxu0 0.0
    %125 = vmatpush2.msra.mxu0 0.0
    %126 = vmatprep.subr.mxu0 0.0
    %127 = vmatpush2.msra.mxu0 0.0
    %128 = vmatprep.subr.mxu0 0.0
    %129 = vmatpush2.msra.mxu0 0.0
    %130 = vmatprep.subr.mxu0 0.0
    %131 = vmatpush2.msra.mxu0 0.0
    %132 = vmatprep.subr.mxu0 0.0
    %133 = vmatpush2.msra.mxu0 0.0
    %134 = vmatprep.subr.mxu0 0.0
    %135 = vmatpush2.msra.mxu0 0.0
    %136 = vmatprep.subr.mxu0 0.0
    %137 = vmatpush2.msra.mxu0 0.0
    %138 = vmatprep.subr.mxu0 0.0
    %139 = vmatpush2.msra.mxu0 0.0
    %140 = vmatprep.subr.mxu0 0.0
    %141 = vmatpush2.msra.mxu0 0.0
    %142 = vmatprep.mubr.f32.mxu0 0.0
    %143 = vmatmul.mubr.f32.gmra.mxu0 %v67
    %v144 = vpop.f32.mrf.mxu0
    %v145 = vadd.f32 %v63, %v144
    %v146 = vpop.f32.mrf.mxu0
    %147 = vmatprep.mubr.f32.mxu0 0.0
    %148 = vmatmul.mubr.f32.gmra.mxu0 %v70
    %v149 = vpop.f32.mrf.mxu0
    %v150 = vadd.f32 %v63, %v149
    %v151 = vpop.f32.mrf.mxu0
    %152 = vmatprep.mubr.f32.mxu0 0.0
    %153 = vmatmul.mubr.f32.gmra.mxu0 %v73
    %v154 = vpop.f32.mrf.mxu0
    %v155 = vadd.f32 %v63, %v154
    %v156 = vpop.f32.mrf.mxu0
    %157 = vmatprep.mubr.f32.mxu0 0.0
    %158 = vmatmul.mubr.f32.gmra.mxu0 %v76
    %v159 = vpop.f32.mrf.mxu0
    %v160 = vadd.f32 %v63, %v159
    %v161 = vpop.f32.mrf.mxu0
    %162 = vdwg.mxu0
    %v163 = vlaneseq
    %v164 = vand.u32 %v163, 127
    %vm165 = vcmp.lt.s32.totalorder %v164, 32
    %v166 = vand.u32 2147483647, %v145
    %v167 = vand.u32 2147483647, %v150
    %v168 = vand.u32 2147483647, %v155
    %v169 = vand.u32 2147483647, %v160
    %v170 = vmul.f32 %v166, 0.23164189
    %v171 = vmul.f32 %v167, 0.23164189
    %v172 = vmul.f32 %v168, 0.23164189
    %v173 = vmul.f32 %v169, 0.23164189
    %v174 = vadd.f32 %v170, 1.0
    %v175 = vadd.f32 %v171, 1.0
    %v176 = vadd.f32 %v172, 1.0
    %v177 = vadd.f32 %v173, 1.0
    %v178 = vrcp.pop %v174
    %v179 = vrcp.pop %v175
    %v180 = vrcp.pop %v176
    %v181 = vrcp.pop %v177
    %v182 = vmul.f32 %v178, 1.0614054
    %v183 = vmul.f32 %v179, 1.0614054
    %v184 = vmul.f32 %v180, 1.0614054
    %v185 = vmul.f32 %v181, 1.0614054
    %v186 = vadd.f32 %v182, -1.4531521
    %v187 = vadd.f32 %v183, -1.4531521
    %v188 = vadd.f32 %v184, -1.4531521
    %v189 = vadd.f32 %v185, -1.4531521
    %v190 = vmul.f32 %v186, %v178
    %v191 = vmul.f32 %v187, %v179
    %v192 = vmul.f32 %v188, %v180
    %v193 = vmul.f32 %v189, %v181
    %v194 = vadd.f32 %v190, 1.4214138
    %v195 = vadd.f32 %v191, 1.4214138
    %v196 = vadd.f32 %v192, 1.4214138
    %v197 = vadd.f32 %v193, 1.4214138
    %v198 = vmul.f32 %v194, %v178
    %v199 = vmul.f32 %v195, %v179
    %v200 = vmul.f32 %v196, %v180
    %v201 = vmul.f32 %v197, %v181
    %v202 = vadd.f32 %v198, -0.28449672
    %v203 = vadd.f32 %v199, -0.28449672
    %v204 = vadd.f32 %v200, -0.28449672
    %v205 = vadd.f32 %v201, -0.28449672
    %v206 = vmul.f32 %v202, %v178
    %v207 = vmul.f32 %v203, %v179
    %v208 = vmul.f32 %v204, %v180
    %v209 = vmul.f32 %v205, %v181
    %v210 = vadd.f32 %v206, 0.2548296
    %v211 = vadd.f32 %v207, 0.2548296
    %v212 = vadd.f32 %v208, 0.2548296
    %v213 = vadd.f32 %v209, 0.2548296
    %v214 = vmul.f32 %v210, %v178
    %v215 = vmul.f32 %v211, %v179
    %v216 = vmul.f32 %v212, %v180
    %v217 = vmul.f32 %v213, %v181
    %v218 = vmul.f32 %v145, -0.5
    %v219 = vmul.f32 %v150, -0.5
    %v220 = vmul.f32 %v155, -0.5
    %v221 = vmul.f32 %v160, -0.5
    %v222 = vmul.f32 %v218, %v145
    %v223 = vmul.f32 %v219, %v150
    %v224 = vmul.f32 %v220, %v155
    %v225 = vmul.f32 %v221, %v160
    %v226 = vmul.f32 %v222, 1.442695
    %v227 = vpow.pop %v226
    %v228 = vmul.f32 %v223, 1.442695
    %v229 = vpow.pop %v228
    %v230 = vmul.f32 %v224, 1.442695
    %v231 = vpow.pop %v230
    %v232 = vmul.f32 %v225, 1.442695
    %v233 = vpow.pop %v232
    %v234 = vmul.f32 %v214, %v227
    %v235 = vmul.f32 %v215, %v229
    %v236 = vmul.f32 %v216, %v231
    %v237 = vmul.f32 %v217, %v233
    %v238 = vsub.f32 1.0, %v234
    %v239 = vsub.f32 1.0, %v235
    %v240 = vsub.f32 1.0, %v236
    %v241 = vsub.f32 1.0, %v237
    %vm242 = vcmp.ge.f32.partialorder %v145, 0.0
    %vm243 = vcmp.ge.f32.partialorder %v150, 0.0
    %vm244 = vcmp.ge.f32.partialorder %v155, 0.0
    %vm245 = vcmp.ge.f32.partialorder %v160, 0.0
    %v246 = vsub.f32 0.0, %v238
    %v247 = vsub.f32 0.0, %v239
    %v248 = vsub.f32 0.0, %v240
    %v249 = vsub.f32 0.0, %v241
    %v250 = vsel %vm242, %v238, %v246
    %v251 = vsel %vm243, %v239, %v247
    %v252 = vsel %vm244, %v240, %v248
    %v253 = vsel %vm245, %v241, %v249
    %v254 = vmul.f32 %v145, 0.5
    %v255 = vmul.f32 %v150, 0.5
    %v256 = vmul.f32 %v155, 0.5
    %v257 = vmul.f32 %v160, 0.5
    %v258 = vadd.f32 %v250, 1.0
    %v259 = vadd.f32 %v251, 1.0
    %v260 = vadd.f32 %v252, 1.0
    %v261 = vadd.f32 %v253, 1.0
    %v262 = vmul.f32 %v254, %v258
    %v263 = vmul.f32 %v255, %v259
    %v264 = vmul.f32 %v256, %v260
    %v265 = vmul.f32 %v257, %v261
    %v266 = vsel %vm165, %v262, %v145
    %v267 = vsel %vm165, %v263, %v150
    %v268 = vsel %vm165, %v264, %v155
    %v269 = vsel %vm165, %v265, %v160
    %v270 = vld [vmem:[%s3] sm:$0x1]
    %271 = vmatprep.subr.mxu0 0.0
    %272 = vmatpush1.xpose.msra.mxu0 0.0
    %273 = vmatprep.subr.mxu0 0.0
    %274 = vmatpush1.xpose.msra.mxu0 0.0
    %275 = vmatprep.subr.mxu0 0.0
    %276 = vmatpush1.xpose.msra.mxu0 0.0
    %277 = vmatprep.subr.mxu0 0.0
    %278 = vmatpush1.xpose.msra.mxu0 0.0
    %279 = vmatprep.subr.mxu0 0.0
    %280 = vmatpush1.xpose.msra.mxu0 0.0
    %281 = vmatprep.subr.mxu0 0.0
    %282 = vmatpush1.xpose.msra.mxu0 0.0
    %283 = vmatprep.subr.mxu0 0.0
    %284 = vmatpush1.xpose.msra.mxu0 0.0
    %285 = vmatprep.subr.mxu0 0.0
    %286 = vmatpush1.xpose.msra.mxu0 0.0
    %287 = vmatprep.subr.mxu0 0.0
    %288 = vmatpush1.xpose.msra.mxu0 0.0
    %289 = vmatprep.subr.mxu0 0.0
    %290 = vmatpush1.xpose.msra.mxu0 0.0
    %291 = vmatprep.subr.mxu0 0.0
    %292 = vmatpush1.xpose.msra.mxu0 0.0
    %293 = vmatprep.subr.mxu0 0.0
    %294 = vmatpush1.xpose.msra.mxu0 0.0
    %295 = vmatprep.subr.mxu0 0.0
    %296 = vmatpush1.xpose.msra.mxu0 %v269
    %297 = vmatprep.subr.mxu0 0.0
    %298 = vmatpush1.xpose.msra.mxu0 %v268
    %299 = vmatprep.subr.mxu0 0.0
    %300 = vmatpush1.xpose.msra.mxu0 %v267
    %301 = vmatprep.subr.mxu0 0.0
    %302 = vmatpush1.xpose.msra.mxu0 %v266
    %303 = vmatprep.subr.mxu0 0.0
    %304 = vmatpush2.xpose.msra.mxu0 0.0
    %305 = vmatprep.subr.mxu0 0.0
    %306 = vmatpush2.xpose.msra.mxu0 0.0
    %307 = vmatprep.subr.mxu0 0.0
    %308 = vmatpush2.xpose.msra.mxu0 0.0
    %309 = vmatprep.subr.mxu0 0.0
    %310 = vmatpush2.xpose.msra.mxu0 0.0
    %311 = vmatprep.subr.mxu0 0.0
    %312 = vmatpush2.xpose.msra.mxu0 0.0
    %313 = vmatprep.subr.mxu0 0.0
    %314 = vmatpush2.xpose.msra.mxu0 0.0
    %315 = vmatprep.subr.mxu0 0.0
    %316 = vmatpush2.xpose.msra.mxu0 0.0
    %317 = vmatprep.subr.mxu0 0.0
    %318 = vmatpush2.xpose.msra.mxu0 0.0
    %319 = vmatprep.subr.mxu0 0.0
    %320 = vmatpush2.xpose.msra.mxu0 0.0
    %321 = vmatprep.subr.mxu0 0.0
    %322 = vmatpush2.xpose.msra.mxu0 0.0
    %323 = vmatprep.subr.mxu0 0.0
    %324 = vmatpush2.xpose.msra.mxu0 0.0
    %325 = vmatprep.subr.mxu0 0.0
    %326 = vmatpush2.xpose.msra.mxu0 0.0
    %327 = vmatprep.subr.mxu0 0.0
    %328 = vmatpush2.xpose.msra.mxu0 0.0
    %329 = vmatprep.subr.mxu0 0.0
    %330 = vmatpush2.xpose.msra.mxu0 0.0
    %331 = vmatprep.subr.mxu0 0.0
    %332 = vmatpush2.xpose.msra.mxu0 0.0
    %333 = vmatprep.subr.mxu0 0.0
    %334 = vmatpush2.xpose.msra.mxu0 0.0
    %335 = vmatprep.mubr.f32.mxu0 0.0
    %336 = vmatmul.mubr.f32.gmra.mxu0 %v270
    %v337 = vpop.f32.mrf.mxu0
    %v338 = vadd.f32 0.0, %v337
    %v339 = vpop.f32.mrf.mxu0
    %340 = vdwg.mxu0
    %vm341 = vcmask 253952
    %342 = vst.msk [vmem:[#allocation7] sm:$0x1] %vm341, %v338
    // Predicated region
    $region26: #{tpu_custom_call.1} parent=1 // pred_check
      _
    $region27: #{tpu_custom_call.1} parent=1 // pred_check_branch
      %344 = sbr.rel (0) target = $region29
    $region28: #{tpu_custom_call.1} parent=1 // pred_region
      %s346 = ssub.s32 16, 16
      %347 = vsyncadd [#allocation4], %s346
      %s349 = sshll.u32 [#allocation7], 4
      %s350 = int_to_ptr.vmem [resolvable:$true] %s349
      %352 = dma.vmem_to_hbm [thread:$0]  %s350, 16, %s4, [#allocation4]
    $region29: #{tpu_custom_call.1} parent=1 // pred_fallthru
      _
    // Predicated region
    $region30: #{tpu_custom_call.1} parent=1 // pred_check
      _
    $region31: #{tpu_custom_call.1} parent=1 // pred_check_branch
      %354 = sbr.rel (0) target = $region33
    $region32: #{tpu_custom_call.1} parent=1 // pred_region
      %355 = dma.done [#allocation4], 16
    $region33: #{tpu_custom_call.1} parent=1 // pred_fallthru
      _
    %356 = vsyncpa [#allocation3], 1
    %357 = vsyncpa [#allocation6], 1
    %358 = vsyncpa [#allocation4], 1

</llo_original>
